<compile_context>
chip_gen: v7x
topology: tpu7x:2x2x1
jax: 0.10.0
libtpu: 0.0.40
codegen_flags: <defaults>
</compile_context>

<pallas_src>
import math

import jax
import jax.numpy as jnp
from jax.experimental import pallas as pl
from jax.experimental.pallas import tpu as pltpu

_LANE = 128                 # TPU vreg lane width
_MAX_LANE_MULT = 256        # cap slab width at 256 * 128 = 32768 lanes
_MAX_DMA_CHUNKS = 4         # outstanding HBM->HBM DMA chunks


# ---------------------------------------------------------------------------
# Hardware-aware parameters
# ---------------------------------------------------------------------------
def _hw_params():
    """Generation-aware (target_block_bytes, vmem_limit_bytes) for the
    VMEM-staged pipeline.  Double-buffered in+out footprint = 4 * block."""
    vmem_cap = 64 << 20                      # conservative default (v7x per-TC)
    try:
        info = pltpu.get_tpu_info()
        cap = getattr(info, "vmem_capacity_bytes", None)
        if cap:
            vmem_cap = int(cap)
    except Exception:
        pass
    if vmem_cap >= (96 << 20):
        # v5e / v6e (128 MiB physical): 16 MiB blocks, 4x16 = 64 MiB < 72 MiB.
        return 16 << 20, 72 << 20
    # v7x (64 MiB physical): 6 MiB blocks, 4x6 = 24 MiB < 40 MiB.
    return 6 << 20, 40 << 20


def _is_v7x() -> bool:
    """True when the local chip has two TensorCores sharing the workload."""
    try:
        kind = jax.devices()[0].device_kind.lower()
    except Exception:
        return False
    return ("v7" in kind) or ("7x" in kind)


def _sublane_multiple(dtype) -> int:
    # Second-minor block granularity per dtype packing (f32: 8, bf16: 16, i8: 32).
    itemsize = jnp.dtype(dtype).itemsize
    return {4: 8, 2: 16, 1: 32}.get(itemsize, 8)


def _as_lane_dense_slab(x_flat):
    """Reshape the contiguous buffer into a lane-dense 2-D slab (rows, cols)
    with cols a large multiple of 128 (unmasked vst).  Pure metadata reshape.
    Returns None if the element count is not a multiple of 128."""
    n = x_flat.size
    if n == 0 or n % _LANE != 0:
        return None
    lane_rows = n // _LANE
    g = 1
    for cand in range(min(_MAX_LANE_MULT, lane_rows), 0, -1):
        if lane_rows % cand == 0:
            g = cand
            break
    cols = _LANE * g
    return x_flat.reshape(n // cols, cols)


# ---------------------------------------------------------------------------
# Path 1: direct chunked HBM -> HBM DMA (no VMEM staging, no vregs)
# ---------------------------------------------------------------------------
def _copy_2d_hbm_dma(x2d):
    r, c = x2d.shape
    n_chunks = max(1, min(_MAX_DMA_CHUNKS, r))
    base, rem = divmod(r, n_chunks)
    sizes = [base + (1 if i < rem else 0) for i in range(n_chunks)]
    sizes = [s for s in sizes if s > 0]
    starts = [sum(sizes[:i]) for i in range(len(sizes))]
    n_chunks = len(sizes)

    def kernel(x_hbm, o_hbm, sems):
        copies = []
        for i in range(n_chunks):          # static Python loop: static slices
            cp = pltpu.make_async_copy(
                x_hbm.at[pl.ds(starts[i], sizes[i]), :],
                o_hbm.at[pl.ds(starts[i], sizes[i]), :],
                sems.at[i],
            )
            cp.start()
            copies.append(cp)
        for cp in copies:                  # all chunks outstanding, then wait
            cp.wait()

    return pl.pallas_call(
        kernel,
        out_shape=jax.ShapeDtypeStruct((r, c), x2d.dtype),
        in_specs=[pl.BlockSpec(memory_space=pl.ANY)],
        out_specs=pl.BlockSpec(memory_space=pl.ANY),
        scratch_shapes=[pltpu.SemaphoreType.DMA((n_chunks,))],
    )(x2d)


# ---------------------------------------------------------------------------
# Path 2: VMEM-staged pipelined copy (BlockSpec auto double-buffering)
# ---------------------------------------------------------------------------
def _copy_kernel(x_ref, o_ref):
    # Pure identity copy of the current block (DMA-bound; no compute added).
    o_ref[...] = x_ref[...]


def _copy_2d_pipelined(x2d):
    r, c = x2d.shape
    itemsize = jnp.dtype(x2d.dtype).itemsize
    sub = _sublane_multiple(x2d.dtype)
    target_block_bytes, vmem_limit = _hw_params()

    if r <= sub:
        br = r                                       # full dim: always legal
    else:
        rows_fit = max(sub, target_block_bytes // (c * itemsize))
        br = min(r, max(sub, (rows_fit // sub) * sub))
    # TODO(synk): a ragged row wider than the VMEM budget (c*itemsize*4*sub >
    # vmem_limit) would need a column split; the default "dma" path covers it.

    grid = (pl.cdiv(r, br),)

    def call(dim_sem):
        return pl.pallas_call(
            _copy_kernel,
            out_shape=jax.ShapeDtypeStruct((r, c), x2d.dtype),
            grid_spec=pltpu.PrefetchScalarGridSpec(
                num_scalar_prefetch=0,
                grid=grid,
                in_specs=[pl.BlockSpec((br, c), lambda i: (i, 0))],
                out_specs=pl.BlockSpec((br, c), lambda i: (i, 0)),
            ),
            compiler_params=pltpu.CompilerParams(
                dimension_semantics=dim_sem,
                vmem_limit_bytes=vmem_limit,
            ),
        )(x2d)

    if _is_v7x():
        # CORE_PARALLEL actually shards the row grid across the 2 TensorCores.
        try:
            return call((pltpu.CORE_PARALLEL,))
        except Exception:
            pass  # conservative fallback if this axis can't be core-sharded
    return call(("parallel",))


# ---------------------------------------------------------------------------
# Public wrapper: PyTorch Unflatten.forward equivalent
# ---------------------------------------------------------------------------
def unflatten(x, size, *, materialize=False, method="auto", donate_input=False):
    """Pallas/JAX equivalent of x.view(x.shape[0], *size).

    materialize=False : production path — free metadata reshape (no kernel).
    materialize=True  : physically copy into a fresh HBM buffer.
        method="auto"     : HBM->HBM DMA, falling back to the VMEM pipeline.
        method="dma"      : chunked HBM->HBM DMA only.
        method="pipeline" : tiled lane-dense copy through VMEM.
    donate_input=True : caller donates x, so the reshaped view *is* the
        materialized buffer — skip the copy (an aliased self-copy would just
        burn 2x HBM bandwidth).
    """
    if method not in ("auto", "dma", "pipeline"):
        raise ValueError(f"unknown method {method!r}")

    b = x.shape[0]
    f = math.prod(size)
    assert math.prod(x.shape[1:]) == f, "prod(size) must match per-sample numel"
    out_shape = (b, *size)

    if not materialize or donate_input:
        # Unflatten is a view; no data movement needed.
        return x.reshape(out_shape)

    if x.size == 0:
        # Nothing to copy; a zero-sized fresh buffer is just the reshape.
        return x.reshape(out_shape)

    x_flat = x.reshape(b, f)

    if method in ("auto", "dma"):
        try:
            return _copy_2d_hbm_dma(x_flat).reshape(out_shape)
        except Exception:
            if method == "dma":
                raise
            # "auto": backend rejected ANY->ANY local DMA; use the pipeline.

    slab = _as_lane_dense_slab(x_flat)
    if slab is not None:
        return _copy_2d_pipelined(slab).reshape(out_shape)

    # Ragged element count (numel % 128 != 0): tile the natural (b, f) shape.
    # Block dims equal to the full array dims are always legal; the only cost
    # is a masked vst on the sub-128 tail.
    return _copy_2d_pipelined(x_flat).reshape(out_shape)


# ---------------------------------------------------------------------------
# Self-test
# ---------------------------------------------------------------------------
if __name__ == "__main__":
    key = jax.random.PRNGKey(0)
    k0, k1 = jax.random.split(key)

    # Shapes consistent with a TransposeCNN decoder input: a flat latent of
    # width C*H*W = 4*16*16 = 1024 per sample.
    batch = 2
    size = (4, 16, 16)
    feat = math.prod(size)

    x = jax.random.normal(k0, (batch, feat), dtype=jnp.float32)
    y_ref = x.reshape(batch, *size)

    # 1) Materialized copy, default path (HBM->HBM DMA, pipeline fallback).
    y_auto = jax.block_until_ready(unflatten(x, size, materialize=True))
    assert y_auto.shape == (batch, *size) and y_auto.dtype == x.dtype
    assert bool(jnp.array_equal(y_auto, y_ref))

    # 2) Materialized copy, explicit VMEM pipeline path (lane-dense slab).
    y_pipe = jax.block_until_ready(
        unflatten(x, size, materialize=True, method="pipeline"))
    assert bool(jnp.array_equal(y_pipe, y_ref))

    # 3) Ragged per-sample numel (105, not a multiple of 128): natural-shape
    #    pipelined copy (previously an un-materialized TODO branch).
    size_r = (3, 5, 7)
    feat_r = math.prod(size_r)
    x_r = jax.random.normal(k1, (batch, feat_r), dtype=jnp.float32)
    y_r = jax.block_until_ready(
        unflatten(x_r, size_r, materialize=True, method="pipeline"))
    assert y_r.shape == (batch, *size_r)
    assert bool(jnp.array_equal(y_r, x_r.reshape(batch, *size_r)))

    # 4) Production (view) path and donated-input path (both copy-free).
    y_view = unflatten(x, size)
    y_don = unflatten(x, size, materialize=True, donate_input=True)
    assert bool(jnp.array_equal(y_view, y_ref))
    assert bool(jnp.array_equal(y_don, y_ref))

    print("KERNEL_OK")
</pallas_src>

<mosaic_0001>
module attributes {stable_mosaic.version = 11 : i64} {
  func.func @kernel(%arg0: memref<2x1024xf32, #tpu.memory_space<any>>, %arg1: memref<2x1024xf32, #tpu.memory_space<any>>, %arg2: memref<2x!tpu.dma_semaphore, #tpu.memory_space<semaphore_mem>>) attributes {dimension_semantics = [], scalar_prefetch = 0 : i64, scratch_operands = 1 : i64, tpu.core_type = #tpu.core_type<tc>} {
    %c0_i32 = arith.constant 0 : i32
    %c0_i32_0 = arith.constant 0 : i32
    %c0_i32_1 = arith.constant 0 : i32
    %0 = tpu.memref_slice %arg0[%c0_i32_0, %c0_i32_1] : memref<2x1024xf32, #tpu.memory_space<any>> -> memref<1x1024xf32, #tpu.memory_space<any>>
    %c0_i32_2 = arith.constant 0 : i32
    %c0_i32_3 = arith.constant 0 : i32
    %1 = tpu.memref_slice %arg1[%c0_i32_2, %c0_i32_3] : memref<2x1024xf32, #tpu.memory_space<any>> -> memref<1x1024xf32, #tpu.memory_space<any>>
    %2 = tpu.memref_slice %arg2[%c0_i32] : memref<2x!tpu.dma_semaphore, #tpu.memory_space<semaphore_mem>> -> memref<1x!tpu.dma_semaphore, #tpu.memory_space<semaphore_mem>>
    %3 = tpu.memref_squeeze %2 : memref<1x!tpu.dma_semaphore, #tpu.memory_space<semaphore_mem>> -> memref<!tpu.dma_semaphore, #tpu.memory_space<semaphore_mem>>
    tpu.enqueue_dma source(%0 : memref<1x1024xf32, #tpu.memory_space<any>>) target(%1 : memref<1x1024xf32, #tpu.memory_space<any>>) target_semaphore(%3 : memref<!tpu.dma_semaphore, #tpu.memory_space<semaphore_mem>>)
    %c1_i32 = arith.constant 1 : i32
    %c1_i32_4 = arith.constant 1 : i32
    %c0_i32_5 = arith.constant 0 : i32
    %4 = tpu.memref_slice %arg0[%c1_i32_4, %c0_i32_5] : memref<2x1024xf32, #tpu.memory_space<any>> -> memref<1x1024xf32, #tpu.memory_space<any>>
    %c1_i32_6 = arith.constant 1 : i32
    %c0_i32_7 = arith.constant 0 : i32
    %5 = tpu.memref_slice %arg1[%c1_i32_6, %c0_i32_7] : memref<2x1024xf32, #tpu.memory_space<any>> -> memref<1x1024xf32, #tpu.memory_space<any>>
    %6 = tpu.memref_slice %arg2[%c1_i32] : memref<2x!tpu.dma_semaphore, #tpu.memory_space<semaphore_mem>> -> memref<1x!tpu.dma_semaphore, #tpu.memory_space<semaphore_mem>>
    %7 = tpu.memref_squeeze %6 : memref<1x!tpu.dma_semaphore, #tpu.memory_space<semaphore_mem>> -> memref<!tpu.dma_semaphore, #tpu.memory_space<semaphore_mem>>
    tpu.enqueue_dma source(%4 : memref<1x1024xf32, #tpu.memory_space<any>>) target(%5 : memref<1x1024xf32, #tpu.memory_space<any>>) target_semaphore(%7 : memref<!tpu.dma_semaphore, #tpu.memory_space<semaphore_mem>>)
    %c0_i32_8 = arith.constant 0 : i32
    %c0_i32_9 = arith.constant 0 : i32
    %c0_i32_10 = arith.constant 0 : i32
    %8 = tpu.memref_slice %arg0[%c0_i32_9, %c0_i32_10] : memref<2x1024xf32, #tpu.memory_space<any>> -> memref<1x1024xf32, #tpu.memory_space<any>>
    %c0_i32_11 = arith.constant 0 : i32
    %c0_i32_12 = arith.constant 0 : i32
    %9 = tpu.memref_slice %arg1[%c0_i32_11, %c0_i32_12] : memref<2x1024xf32, #tpu.memory_space<any>> -> memref<1x1024xf32, #tpu.memory_space<any>>
    %10 = tpu.memref_slice %arg2[%c0_i32_8] : memref<2x!tpu.dma_semaphore, #tpu.memory_space<semaphore_mem>> -> memref<1x!tpu.dma_semaphore, #tpu.memory_space<semaphore_mem>>
    %11 = tpu.memref_squeeze %10 : memref<1x!tpu.dma_semaphore, #tpu.memory_space<semaphore_mem>> -> memref<!tpu.dma_semaphore, #tpu.memory_space<semaphore_mem>>
    tpu.wait_dma2 semaphore(%11 : memref<!tpu.dma_semaphore, #tpu.memory_space<semaphore_mem>>) src(%8 : memref<1x1024xf32, #tpu.memory_space<any>>) dst(%9 : memref<1x1024xf32, #tpu.memory_space<any>>)
    %c1_i32_13 = arith.constant 1 : i32
    %c1_i32_14 = arith.constant 1 : i32
    %c0_i32_15 = arith.constant 0 : i32
    %12 = tpu.memref_slice %arg0[%c1_i32_14, %c0_i32_15] : memref<2x1024xf32, #tpu.memory_space<any>> -> memref<1x1024xf32, #tpu.memory_space<any>>
    %c1_i32_16 = arith.constant 1 : i32
    %c0_i32_17 = arith.constant 0 : i32
    %13 = tpu.memref_slice %arg1[%c1_i32_16, %c0_i32_17] : memref<2x1024xf32, #tpu.memory_space<any>> -> memref<1x1024xf32, #tpu.memory_space<any>>
    %14 = tpu.memref_slice %arg2[%c1_i32_13] : memref<2x!tpu.dma_semaphore, #tpu.memory_space<semaphore_mem>> -> memref<1x!tpu.dma_semaphore, #tpu.memory_space<semaphore_mem>>
    %15 = tpu.memref_squeeze %14 : memref<1x!tpu.dma_semaphore, #tpu.memory_space<semaphore_mem>> -> memref<!tpu.dma_semaphore, #tpu.memory_space<semaphore_mem>>
    tpu.wait_dma2 semaphore(%15 : memref<!tpu.dma_semaphore, #tpu.memory_space<semaphore_mem>>) src(%12 : memref<1x1024xf32, #tpu.memory_space<any>>) dst(%13 : memref<1x1024xf32, #tpu.memory_space<any>>)
    return
  }
}

module attributes {stable_mosaic.version = 11 : i64} {
  func.func @_copy_kernel(%arg0: i32, %arg1: memref<1x2048xf32, #tpu.memory_space<vmem>>, %arg2: memref<1x2048xf32, #tpu.memory_space<vmem>>) attributes {dimension_semantics = [#tpu.dimension_semantics<parallel>], iteration_bounds = array<i64: 1>, scalar_prefetch = 0 : i64, scratch_operands = 0 : i64, tpu.core_type = #tpu.core_type<tc>, window_params = [{transform_indices = @transform_0, window_bounds = array<i64: 1, 2048>}, {transform_indices = @transform_1, window_bounds = array<i64: 1, 2048>}]} {
    %c0 = arith.constant 0 : index
    %c0_0 = arith.constant 0 : index
    %0 = vector.load %arg1[%c0, %c0_0] : memref<1x2048xf32, #tpu.memory_space<vmem>>, vector<1x2048xf32>
    %c0_1 = arith.constant 0 : index
    %c0_2 = arith.constant 0 : index
    %1 = vector.load %arg2[%c0_1, %c0_2] : memref<1x2048xf32, #tpu.memory_space<vmem>>, vector<1x2048xf32>
    tpu.vector_store %arg2[%c0_1, %c0_2], %0 {strides = array<i32>} : memref<1x2048xf32, #tpu.memory_space<vmem>>, vector<1x2048xf32>,
    return
  }
  func.func @transform_0(%arg0: i32) -> (i32, i32) {
    %c0_i32 = arith.constant 0 : i32
    %c0_i32_0 = arith.constant 0 : i32
    return %arg0, %c0_i32 : i32, i32
  }
  func.func @transform_1(%arg0: i32) -> (i32, i32) {
    %c0_i32 = arith.constant 0 : i32
    %c0_i32_0 = arith.constant 0 : i32
    return %arg0, %c0_i32 : i32, i32
  }
}

</mosaic_0001>

<llo_original>
// kernel: tpu_custom_call.1
$region0: #{tpu_custom_call.1}
  #allocation0 [shape = 'u32[]', space=smem, size = 0x4, offset = 0x4, fixed_abs, tag = 'smem constant byte address 0x4 - core index']
  #allocation1 [shape = 'u32[144,128]{1,0:T(1,128)}', space=vmem, size = 0x12000, scoped, tag = 'internal scratch']
  #allocation2 [shape = 's32[2]{0}', space=sflag, size = 0x8, scoped, tag = 'scratch operand']
  #allocation3 [shape = 's32[]', space=sflag, size = 0x4, offset = 0, fixed_abs, tag = 'sflag constant byte address 0x0 - dummy sync flag']
  #allocation5 [shape = 's32[]', space=sflag, size = 0x4, offset = 0, fixed_abs, tag = 'sflag constant byte address 0x0 - dummy sync flag']
  %s0 = inlined_call_operand.hbm [shape: f32[2,1024], index: 0, kind: input, shape index: {}]
  %s1 = inlined_call_operand.hbm [shape: f32[2,1024], index: 1, kind: output, shape index: {}]
  %s2 = sld [smem:[#allocation0]]
  $region2: #{tpu_custom_call.1} parent=0
    _
  %s4 = ssub.s32 1, %s2
  %s5 = scalar_select 0, %s4, %s2
  $region1: #{tpu_custom_call.1} parent=0
    #allocation4 [shape = 'u32[3]{0}', space=smem, size = 0xc, scoped, tag = 'DMA stride descriptor']
    #allocation6 [shape = 'u32[3]{0}', space=smem, size = 0xc, scoped, tag = 'DMA stride descriptor']
    %s7 = sshll.u32 1, 14
    %s8 = sxor.u32 4294967295, %s7
    %s11 = sshll.u32 3, 24
    %s12 = sxor.u32 4294967295, %s11
    %s13 = sand.u32 0, %s12
    %s15 = sor.u32 %s13, 0
    %18 = sst [smem:[#allocation4]] 32
    %s19 = scalar_lea.smem [#allocation4], 1
    %20 = sst [smem:[%s19]] 32
    %s21 = scalar_lea.smem [#allocation4], 2
    %22 = sst [smem:[%s21]] 1
    %24 = dma.general %s0, 128, %s1, [#allocation2], [#allocation3], [#allocation4], %s15, 0
    %s25 = scalar_lea.hbm %s0, 16
    %s26 = scalar_lea.hbm %s1, 16
    %s27 = scalar_lea.sflag [#allocation2], 1
    %s29 = sshll.u32 1, 14
    %s30 = sxor.u32 4294967295, %s29
    %s33 = sshll.u32 3, 24
    %s34 = sxor.u32 4294967295, %s33
    %s35 = sand.u32 0, %s34
    %s37 = sor.u32 %s35, 0
    %40 = sst [smem:[#allocation6]] 32
    %s41 = scalar_lea.smem [#allocation6], 1
    %42 = sst [smem:[%s41]] 32
    %s43 = scalar_lea.smem [#allocation6], 2
    %44 = sst [smem:[%s43]] 1
    %46 = dma.general %s25, 128, %s26, %s27, [#allocation5], [#allocation6], %s37, 0
    %s47 = smul.u32 1, 8
    %s48 = sshll.u32 %s47, 4
    %49 = dma.done [#allocation2], %s48
    %s50 = sshll.u32 %s47, 4
    %51 = dma.done %s27, %s50
  %52 = vsyncmov [#allocation2]
  %s53 = vpop.sfrf %52
  %p54 = scmp.eq.s32.totalorder %s53, 0
  %p55 = pneg %p54
  %57 = shalt.err (%p55)
  %s58 = scalar_lea.sflag [#allocation2], 1
  %59 = vsyncmov %s58
  %s60 = vpop.sfrf %59
  %p61 = scmp.eq.s32.totalorder %s60, 0
  %p62 = pneg %p61
  %64 = shalt.err (%p62)

// kernel: tpu_custom_call.1
$region0: #{tpu_custom_call.1}
  #allocation0 [shape = 'u32[]', space=smem, size = 0x4, offset = 0x4, fixed_abs, tag = 'smem constant byte address 0x4 - core index']
  #allocation1 [shape = 'u32[144,128]{1,0:T(1,128)}', space=vmem, size = 0x12000, scoped, tag = 'internal scratch']
  %s0 = inlined_call_operand.hbm [shape: f32[1,2048], index: 0, kind: input, shape index: {}]
  %s1 = inlined_call_operand.hbm [shape: f32[1,2048], index: 1, kind: output, shape index: {}]
  %s2 = sld [smem:[#allocation0]]
  $region18: #{tpu_custom_call.1} parent=0
    _
  %s4 = ssub.s32 1, %s2
  %s5 = scalar_select 0, %s4, %s2
  $region1: #{tpu_custom_call.1} parent=0
    #allocation2 [shape = 'u8[8192]{0}', space=vmem, size = 0x2000, scoped, tag = 'input window, operand 0, single buffered']
    #allocation3 [shape = 's32[1]{0}', space=sflag, size = 0x4, scoped, tag = 'scoped memory for tpu_custom_call.1']
    #allocation4 [shape = 's32[1]{0}', space=sflag, size = 0x4, scoped, tag = 'scoped memory for tpu_custom_call.1']
    #allocation5 [shape = 'u8[8192]{0}', space=vmem, size = 0x2000, scoped, tag = 'output window, operand 0, single buffered']
    %6 = vsyncpa [#allocation3], 0
    %7 = vsyncpa [#allocation4], 0
    // Predicated region
    $region2: #{tpu_custom_call.1} parent=1 // pred_check
      _
    $region3: #{tpu_custom_call.1} parent=1 // pred_check_branch
      %9 = sbr.rel (0) target = $region5
    $region4: #{tpu_custom_call.1} parent=1 // pred_region
      %s11 = ssub.s32 256, 256
      %12 = vsyncadd [#allocation3], %s11
      %s14 = sshll.u32 [#allocation2], 4
      %s15 = int_to_ptr.vmem [resolvable:$true] %s14
      %17 = dma.hbm_to_vmem [thread:$0]  %s0, 256, %s15, [#allocation3]
    $region5: #{tpu_custom_call.1} parent=1 // pred_fallthru
      _
    // Predicated region
    $region6: #{tpu_custom_call.1} parent=1 // pred_check
      _
    $region7: #{tpu_custom_call.1} parent=1 // pred_check_branch
      %19 = sbr.rel (0) target = $region9
    $region8: #{tpu_custom_call.1} parent=1 // pred_region
      %20 = dma.done [#allocation3], 256
    $region9: #{tpu_custom_call.1} parent=1 // pred_fallthru
      _
    %v21 = vld [vmem:[#allocation2] sm:$0xff]
    %v22 = vld [vmem:[#allocation2 + $0x8] sm:$0xff]
    %23 = vst [vmem:[#allocation5] sm:$0xff] %v21
    %24 = vst [vmem:[#allocation5 + $0x8] sm:$0xff] %v22
    // Predicated region
    $region10: #{tpu_custom_call.1} parent=1 // pred_check
      _
    $region11: #{tpu_custom_call.1} parent=1 // pred_check_branch
      %26 = sbr.rel (0) target = $region13
    $region12: #{tpu_custom_call.1} parent=1 // pred_region
      %s28 = ssub.s32 256, 256
      %29 = vsyncadd [#allocation4], %s28
      %s31 = sshll.u32 [#allocation5], 4
      %s32 = int_to_ptr.vmem [resolvable:$true] %s31
      %34 = dma.vmem_to_hbm [thread:$0]  %s32, 256, %s1, [#allocation4]
    $region13: #{tpu_custom_call.1} parent=1 // pred_fallthru
      _
    // Predicated region
    $region14: #{tpu_custom_call.1} parent=1 // pred_check
      _
    $region15: #{tpu_custom_call.1} parent=1 // pred_check_branch
      %36 = sbr.rel (0) target = $region17
    $region16: #{tpu_custom_call.1} parent=1 // pred_region
      %37 = dma.done [#allocation4], 256
    $region17: #{tpu_custom_call.1} parent=1 // pred_fallthru
      _
    %38 = vsyncpa [#allocation3], 1
    %39 = vsyncpa [#allocation4], 1

</llo_original>
